<compile_context>
chip_gen: v5e
topology: v5e:2x2
jax: 0.10.0
libtpu: 0.0.40
codegen_flags: <defaults>
</compile_context>

<pallas_src>
import jax
import jax.numpy as jnp
from jax.experimental import pallas as pl
from jax.experimental.pallas import tpu as pltpu


# ---------------------------------------------------------------------------
# Tiling helpers
# ---------------------------------------------------------------------------
def _pick_tile_j(n):
    """Largest j-tile <= min(512, 8MiB/fT-row) that divides N, preferring 128-aligned."""
    cap = min(512, max(128, (8 * 1024 * 1024) // (4 * n)))
    if n <= cap:
        return n
    best_aligned, best_any = None, None
    for t in range(cap, 0, -1):
        if n % t == 0:
            if best_any is None:
                best_any = t
            if t % 128 == 0:
                best_aligned = t
                break
    if best_aligned is not None:
        return best_aligned
    if best_any is not None and best_any >= 64:
        return best_any
    # TODO(synk): remainder masking for awkward N; fall back to full fT materialization.
    return n


def _pick_rows_block(r, n):
    """Row block for pass 2: multiple of 8 (or full), targeting ~2 MiB per ref block."""
    target = max(8, (2 * 1024 * 1024) // (4 * n))
    if r <= target or r % 8 != 0:
        return r
    best = 8
    rb = 8
    while rb <= min(r, target):
        if r % rb == 0:
            best = rb
        rb += 8
    return best


# ---------------------------------------------------------------------------
# Kernel 1: per-batch fused projection + j-tiled attention + W conv + BN partial sums.
# ---------------------------------------------------------------------------
def _make_attn_kernel(tile_j, num_j):
    def _attn_kernel(x_ref,      # (1, C, N)      channel-major input (one batch)
                     p_ref,      # (IC+2, C+1)    [w_g ; a_vec/N ; b_vec/N | biases]
                     w_ref,      # (C, IC+1)      [w_W | b_W]
                     wy_ref,     # (1, C, N)      W(y) output
                     st_ref,     # (1, C, 2)      per-batch [sum, sum of squares]
                     yT_ref):    # (IC, N)        VMEM scratch accumulator for y^T
        C = x_ref.shape[1]
        IC = w_ref.shape[1] - 1

        xb = x_ref[0]                                   # (C, N), N on the lane axis
        pmat = p_ref[...]                               # (IC+2, C+1)

        # One fused projection matmul: rows 0..IC-1 -> g, row IC -> a, row IC+1 -> b.
        proj = jnp.dot(pmat[:, :C], xb, preferred_element_type=jnp.float32) + pmat[:, C:]
        gx = proj[:IC]                                  # (IC, N)
        a_row = proj[IC:IC + 1]                         # (1, N)  a_i / N (scale folded)
        b_row = proj[IC + 1:IC + 2]                     # (1, N)  b_j / N

        # y^T[c, i] = sum_j g[c, j] * relu(a_i + b_j)/N, accumulated over j tiles so the
        # only O(N^2) object ever live is one (tile_j, N) slab.
        for jt in range(num_j):                         # static trip count (unrolled)
            j0 = jt * tile_j
            b_col = b_row[:, j0:j0 + tile_j].T          # (tile_j, 1) - per-tile transpose
            fT_t = jnp.maximum(b_col + a_row, 0.0)      # (tile_j, N)
            part = jnp.dot(gx[:, j0:j0 + tile_j], fT_t,
                           preferred_element_type=jnp.float32)   # (IC, N)
            if jt == 0:
                yT_ref[...] = part
            else:
                yT_ref[...] += part

        # W 1x1 conv: (C, IC) @ (IC, N) + b_W  -> lane-dense (C, N).
        wmat = w_ref[...]
        wy = jnp.dot(wmat[:, :IC], yT_ref[...], preferred_element_type=jnp.float32) \
             + wmat[:, IC:]
        wy_ref[0] = wy

        # Per-batch, per-channel partial stats for training-mode BatchNorm
        # (two column stores; no in-kernel concatenate).
        s1 = jnp.sum(wy, axis=1, keepdims=True)         # (C, 1)
        s2 = jnp.sum(wy * wy, axis=1, keepdims=True)    # (C, 1)
        st_ref[0, :, 0:1] = s1
        st_ref[0, :, 1:2] = s2

    return _attn_kernel


# ---------------------------------------------------------------------------
# Kernel 2: BatchNorm affine (precomputed per-row scale/shift) + residual.
# Rows are (batch*channel), lane axis is N -> dense vregs / dense stores.
# ---------------------------------------------------------------------------
def _bn_residual_kernel(wy_ref,   # (Rb, N)
                        x_ref,    # (Rb, N)
                        ss_ref,   # (Rb, 2)  [:,0]=gamma*rsqrt(var+eps), [:,1]=beta-mean*scale
                        out_ref): # (Rb, N)  (aliased to wy buffer)
    ss = ss_ref[...]
    scale = ss[:, 0:1]
    shift = ss[:, 1:2]
    out_ref[...] = scale * wy_ref[...] + shift + x_ref[...]


# ---------------------------------------------------------------------------
# Wrapper
# ---------------------------------------------------------------------------
def nonlocal_block_pallas(x_nchw, params):
    """x_nchw: (B, C, H, W) float32.  Returns z with the same shape."""
    B, C, H, W = x_nchw.shape
    N = H * W
    IC = params["w_theta"].shape[0]

    # Channel-major, lane-dense layout: just a view, no transpose.
    x = x_nchw.reshape(B, C, N)

    # ---- trace-time algebraic folding of theta/phi + concat_project (+ 1/N scale) ----
    inv_n = 1.0 / N
    wct = params["w_concat"][:IC]                                  # (IC,)
    wcp = params["w_concat"][IC:]                                  # (IC,)
    a_vec = (wct @ params["w_theta"]) * inv_n                      # (C,)
    b_vec = (wcp @ params["w_phi"]) * inv_n                        # (C,)
    s_a = jnp.dot(wct, params["b_theta"]) * inv_n                  # scalar
    s_b = jnp.dot(wcp, params["b_phi"]) * inv_n                    # scalar

    # Fused projection weights/biases: [w_g ; a_vec ; b_vec] and [b_g ; s_a ; s_b].
    P = jnp.concatenate([params["w_g"], a_vec[None, :], b_vec[None, :]], axis=0)   # (IC+2, C)
    pb = jnp.concatenate([params["b_g"], jnp.stack([s_a, s_b])], axis=0)           # (IC+2,)
    ppack = jnp.concatenate([P, pb[:, None]], axis=1).astype(jnp.float32)          # (IC+2, C+1)
    wpack = jnp.concatenate([params["w_W"], params["b_W"][:, None]], axis=1)       # (C, IC+1)
    wpack = wpack.astype(jnp.float32)

    # ---- j-tiling and VMEM budget (re-derived for 64 MiB v7x) ----
    tile_j = _pick_tile_j(N)
    if N % tile_j != 0:
        tile_j = N
    num_j = N // tile_j

    ft_bytes = tile_j * N * 4                       # one fT tile
    io_block_bytes = 2 * 2 * C * N * 4              # double-buffered x and wy blocks
    scratch_bytes = max(IC, 8) * N * 4              # yT accumulator (sublane-padded)
    vmem_limit = int(min(48 << 20,
                         max(16 << 20,
                             2 * (ft_bytes + io_block_bytes + scratch_bytes) + (2 << 20))))

    # ---- pass 1: attention + W conv, batch-parallel, with BN partial sums ----
    wy, stats = pl.pallas_call(
        _make_attn_kernel(tile_j, num_j),
        grid=(B,),
        in_specs=[
            pl.BlockSpec((1, C, N), lambda b: (b, 0, 0)),
            pl.BlockSpec((IC + 2, C + 1), lambda b: (0, 0)),
            pl.BlockSpec((C, IC + 1), lambda b: (0, 0)),
        ],
        out_specs=[
            pl.BlockSpec((1, C, N), lambda b: (b, 0, 0)),
            pl.BlockSpec((1, C, 2), lambda b: (b, 0, 0)),
        ],
        out_shape=(
            jax.ShapeDtypeStruct((B, C, N), jnp.float32),
            jax.ShapeDtypeStruct((B, C, 2), jnp.float32),
        ),
        scratch_shapes=[pltpu.VMEM((IC, N), jnp.float32)],
        compiler_params=pltpu.CompilerParams(
            dimension_semantics=("parallel",),
            vmem_limit_bytes=vmem_limit,
        ),
    )(x, ppack, wpack)

    # ---- global BatchNorm statistics (training mode, biased variance, eps=1e-5) ----
    # TODO(synk): single-pass E[x^2]-E[x]^2 in f32 (clamped at 0); switch to two-pass if
    # activations get large relative to their spread.
    cnt = float(B * N)
    s1 = jnp.sum(stats[:, :, 0], axis=0)                            # (C,)
    s2 = jnp.sum(stats[:, :, 1], axis=0)                            # (C,)
    mean = s1 / cnt
    var = jnp.maximum(s2 / cnt - mean * mean, 0.0)
    inv = jax.lax.rsqrt(var + 1e-5)
    scale = params["bn_gamma"] * inv
    shift = params["bn_beta"] - mean * scale
    ss = jnp.stack([scale, shift], axis=1).astype(jnp.float32)      # (C, 2)

    # ---- pass 2: normalize + residual over (B*C, N) rows, wy buffer aliased to output ----
    R = B * C
    wy2 = wy.reshape(R, N)
    x2 = x.reshape(R, N)
    ss_rows = jnp.tile(ss, (B, 1))                                  # (R, 2), row b*C+c -> ss[c]
    Rb = _pick_rows_block(R, N)

    z2 = pl.pallas_call(
        _bn_residual_kernel,
        grid=(R // Rb,),
        in_specs=[
            pl.BlockSpec((Rb, N), lambda r: (r, 0)),
            pl.BlockSpec((Rb, N), lambda r: (r, 0)),
            pl.BlockSpec((Rb, 2), lambda r: (r, 0)),
        ],
        out_specs=pl.BlockSpec((Rb, N), lambda r: (r, 0)),
        out_shape=jax.ShapeDtypeStruct((R, N), jnp.float32),
        input_output_aliases={0: 0},
        compiler_params=pltpu.CompilerParams(
            dimension_semantics=("parallel",),
        ),
    )(wy2, x2, ss_rows)

    return z2.reshape(B, C, H, W)


# ---------------------------------------------------------------------------
# Pure-JAX reference mirroring the PyTorch forward (NCHW)
# ---------------------------------------------------------------------------
def nonlocal_block_reference(x, params):
    B, C, H, W = x.shape
    N = H * W
    IC = params["w_theta"].shape[0]
    xf = x.reshape(B, C, N)

    theta = jnp.einsum("ic,bcn->bin", params["w_theta"], xf) + params["b_theta"][None, :, None]
    phi   = jnp.einsum("ic,bcn->bin", params["w_phi"],   xf) + params["b_phi"][None, :, None]
    g     = jnp.einsum("ic,bcn->bin", params["w_g"],     xf) + params["b_g"][None, :, None]

    a = jnp.einsum("i,bin->bn", params["w_concat"][:IC], theta)
    b = jnp.einsum("i,bin->bn", params["w_concat"][IC:], phi)
    f = jax.nn.relu(a[:, :, None] + b[:, None, :]) / N             # (B, N, N)

    g_x = jnp.transpose(g, (0, 2, 1))                               # (B, N, IC)
    y = jnp.einsum("bnm,bmi->bni", f, g_x)                          # (B, N, IC)
    y_t = jnp.transpose(y, (0, 2, 1))                               # (B, IC, N)

    wy = jnp.einsum("ci,bin->bcn", params["w_W"], y_t) + params["b_W"][None, :, None]

    mean = jnp.mean(wy, axis=(0, 2), keepdims=True)
    var = jnp.mean((wy - mean) ** 2, axis=(0, 2), keepdims=True)
    zn = params["bn_gamma"][None, :, None] * (wy - mean) * jax.lax.rsqrt(var + 1e-5) \
         + params["bn_beta"][None, :, None]
    return (zn + xf).reshape(B, C, H, W)


def make_params(key, C, IC):
    ks = jax.random.split(key, 9)
    kaiming = lambda k, shape, fan_in: jax.random.normal(k, shape, jnp.float32) * jnp.sqrt(2.0 / fan_in)
    return {
        "w_theta": kaiming(ks[0], (IC, C), C),
        "b_theta": jnp.zeros((IC,), jnp.float32),
        "w_phi":   kaiming(ks[1], (IC, C), C),
        "b_phi":   jnp.zeros((IC,), jnp.float32),
        "w_g":     kaiming(ks[2], (IC, C), C),
        "b_g":     jnp.zeros((IC,), jnp.float32),
        "w_concat": kaiming(ks[3], (2 * IC,), 2 * IC),   # Conv2d(2*IC -> 1, 1x1, no bias)
        "w_W":     kaiming(ks[4], (C, IC), IC),
        "b_W":     jnp.zeros((C,), jnp.float32),
        # original init is gamma=0, beta=0 (identity block); use nonzero to exercise compute.
        "bn_gamma": jax.random.normal(ks[5], (C,), jnp.float32) * 0.5 + 1.0,
        "bn_beta":  jax.random.normal(ks[6], (C,), jnp.float32) * 0.1,
    }


if __name__ == "__main__":
    key = jax.random.PRNGKey(0)
    fwd = jax.jit(nonlocal_block_pallas)

    # Test 1: B=2, C=4, 16x16 (N=256, single j-tile path).
    kx1, kp1, key = jax.random.split(key, 3)
    B, C, H, W = 2, 4, 16, 16
    IC = C // 2
    x1 = jax.random.normal(kx1, (B, C, H, W), jnp.float32)
    p1 = make_params(kp1, C, IC)
    z1 = jax.block_until_ready(fwd(x1, p1))
    z1_ref = nonlocal_block_reference(x1, p1)
    assert z1.shape == (B, C, H, W)
    assert jnp.allclose(z1, z1_ref, rtol=1e-4, atol=1e-4), float(jnp.max(jnp.abs(z1 - z1_ref)))

    # Test 2: B=1, C=8, 32x32 (N=1024 -> TILE_J=512, exercises the multi-tile j loop).
    kx2, kp2, key = jax.random.split(key, 3)
    B2, C2, H2, W2 = 1, 8, 32, 32
    IC2 = C2 // 2
    x2 = jax.random.normal(kx2, (B2, C2, H2, W2), jnp.float32)
    p2 = make_params(kp2, C2, IC2)
    z2 = jax.block_until_ready(fwd(x2, p2))
    z2_ref = nonlocal_block_reference(x2, p2)
    assert z2.shape == (B2, C2, H2, W2)
    assert jnp.allclose(z2, z2_ref, rtol=1e-4, atol=1e-4), float(jnp.max(jnp.abs(z2 - z2_ref)))

    print("KERNEL_OK")
</pallas_src>

<mosaic_0001>
module attributes {stable_mosaic.version = 11 : i64} {
  func.func @_attn_kernel(%arg0: i32, %arg1: memref<1x4x256xf32, #tpu.memory_space<vmem>>, %arg2: memref<4x5xf32, #tpu.memory_space<vmem>>, %arg3: memref<4x3xf32, #tpu.memory_space<vmem>>, %arg4: memref<1x4x256xf32, #tpu.memory_space<vmem>>, %arg5: memref<1x4x2xf32, #tpu.memory_space<vmem>>, %arg6: memref<2x256xf32, #tpu.memory_space<vmem>>) attributes {dimension_semantics = [#tpu.dimension_semantics<parallel>], iteration_bounds = array<i64: 2>, scalar_prefetch = 0 : i64, scratch_operands = 1 : i64, tpu.core_type = #tpu.core_type<tc>, window_params = [{transform_indices = @transform_0, window_bounds = array<i64: 1, 4, 256>}, {pipeline_mode = #tpu.pipeline_mode<synchronous>, transform_indices = @transform_1, window_bounds = array<i64: 4, 5>}, {pipeline_mode = #tpu.pipeline_mode<synchronous>, transform_indices = @transform_2, window_bounds = array<i64: 4, 3>}, {transform_indices = @transform_3, window_bounds = array<i64: 1, 4, 256>}, {transform_indices = @transform_4, window_bounds = array<i64: 1, 4, 2>}]} {
    %c0 = arith.constant 0 : index
    %c0_0 = arith.constant 0 : index
    %c0_1 = arith.constant 0 : index
    %0 = vector.load %arg1[%c0, %c0_0, %c0_1] : memref<1x4x256xf32, #tpu.memory_space<vmem>>, vector<1x4x256xf32>
    %1 = vector.shape_cast %0 : vector<1x4x256xf32> to vector<4x256xf32>
    %c0_2 = arith.constant 0 : index
    %c0_3 = arith.constant 0 : index
    %2 = vector.load %arg2[%c0_2, %c0_3] : memref<4x5xf32, #tpu.memory_space<vmem>>, vector<4x5xf32>
    %3 = vector.extract_strided_slice %2 {offsets = [0, 0], sizes = [4, 4], strides = [1, 1]} : vector<4x5xf32> to vector<4x4xf32>
    %cst = arith.constant dense<0.000000e+00> : vector<4x256xf32>
    %4 = tpu.matmul %3, %1, %cst {dimension_numbers = #tpu.dot_dimension_numbers<[1], [0], [0], [1], [0, 0, 1, 1], [], []>} : vector<4x4xf32>, vector<4x256xf32>, vector<4x256xf32> -> vector<4x256xf32>
    %5 = vector.extract_strided_slice %2 {offsets = [0, 4], sizes = [4, 1], strides = [1, 1]} : vector<4x5xf32> to vector<4x1xf32>
    %6 = vector.broadcast %5 : vector<4x1xf32> to vector<4x256xf32>
    %7 = arith.addf %4, %6 : vector<4x256xf32>
    %8 = vector.extract_strided_slice %7 {offsets = [0, 0], sizes = [2, 256], strides = [1, 1]} : vector<4x256xf32> to vector<2x256xf32>
    %9 = vector.extract_strided_slice %7 {offsets = [2, 0], sizes = [1, 256], strides = [1, 1]} : vector<4x256xf32> to vector<1x256xf32>
    %10 = vector.extract_strided_slice %7 {offsets = [3, 0], sizes = [1, 256], strides = [1, 1]} : vector<4x256xf32> to vector<1x256xf32>
    %11 = tpu.transpose %10, [1, 0] : vector<1x256xf32> -> vector<256x1xf32>
    %12 = vector.broadcast %11 : vector<256x1xf32> to vector<256x256xf32>
    %13 = vector.broadcast %9 : vector<1x256xf32> to vector<256x256xf32>
    %14 = arith.addf %12, %13 : vector<256x256xf32>
    %cst_4 = arith.constant 0.000000e+00 : f32
    %15 = vector.broadcast %cst_4 : f32 to vector<256x256xf32>
    %16 = arith.maximumf %14, %15 : vector<256x256xf32>
    %cst_5 = arith.constant dense<0.000000e+00> : vector<2x256xf32>
    %17 = tpu.matmul %8, %16, %cst_5 {dimension_numbers = #tpu.dot_dimension_numbers<[1], [0], [0], [1], [0, 0, 1, 1], [], []>} : vector<2x256xf32>, vector<256x256xf32>, vector<2x256xf32> -> vector<2x256xf32>
    %c0_6 = arith.constant 0 : index
    %c0_7 = arith.constant 0 : index
    %18 = vector.load %arg6[%c0_6, %c0_7] : memref<2x256xf32, #tpu.memory_space<vmem>>, vector<2x256xf32>
    tpu.vector_store %arg6[%c0_6, %c0_7], %17 {strides = array<i32>} : memref<2x256xf32, #tpu.memory_space<vmem>>, vector<2x256xf32>,
    %c0_8 = arith.constant 0 : index
    %c0_9 = arith.constant 0 : index
    %19 = vector.load %arg3[%c0_8, %c0_9] : memref<4x3xf32, #tpu.memory_space<vmem>>, vector<4x3xf32>
    %20 = vector.extract_strided_slice %19 {offsets = [0, 0], sizes = [4, 2], strides = [1, 1]} : vector<4x3xf32> to vector<4x2xf32>
    %c0_10 = arith.constant 0 : index
    %c0_11 = arith.constant 0 : index
    %21 = vector.load %arg6[%c0_10, %c0_11] : memref<2x256xf32, #tpu.memory_space<vmem>>, vector<2x256xf32>
    %cst_12 = arith.constant dense<0.000000e+00> : vector<4x256xf32>
    %22 = tpu.matmul %20, %21, %cst_12 {dimension_numbers = #tpu.dot_dimension_numbers<[1], [0], [0], [1], [0, 0, 1, 1], [], []>} : vector<4x2xf32>, vector<2x256xf32>, vector<4x256xf32> -> vector<4x256xf32>
    %23 = vector.extract_strided_slice %19 {offsets = [0, 2], sizes = [4, 1], strides = [1, 1]} : vector<4x3xf32> to vector<4x1xf32>
    %24 = vector.broadcast %23 : vector<4x1xf32> to vector<4x256xf32>
    %25 = arith.addf %22, %24 : vector<4x256xf32>
    %c0_13 = arith.constant 0 : index
    %c0_14 = arith.constant 0 : index
    %c0_15 = arith.constant 0 : index
    %26 = vector.load %arg4[%c0_13, %c0_14, %c0_15] : memref<1x4x256xf32, #tpu.memory_space<vmem>>, vector<1x4x256xf32>
    %27 = vector.shape_cast %26 : vector<1x4x256xf32> to vector<4x256xf32>
    %28 = vector.shape_cast %25 : vector<4x256xf32> to vector<1x4x256xf32>
    tpu.vector_store %arg4[%c0_13, %c0_14, %c0_15], %28 {strides = array<i32>} : memref<1x4x256xf32, #tpu.memory_space<vmem>>, vector<1x4x256xf32>,
    %cst_16 = arith.constant dense<0.000000e+00> : vector<4xf32>
    %29 = vector.multi_reduction <add>, %25, %cst_16 [1] : vector<4x256xf32> to vector<4xf32>
    %30 = vector.shape_cast %29 : vector<4xf32> to vector<4x1xf32>
    %31 = arith.mulf %25, %25 : vector<4x256xf32>
    %cst_17 = arith.constant dense<0.000000e+00> : vector<4xf32>
    %32 = vector.multi_reduction <add>, %31, %cst_17 [1] : vector<4x256xf32> to vector<4xf32>
    %33 = vector.shape_cast %32 : vector<4xf32> to vector<4x1xf32>
    %c0_18 = arith.constant 0 : index
    %c0_19 = arith.constant 0 : index
    %c0_20 = arith.constant 0 : index
    %34 = vector.load %arg5[%c0_18, %c0_19, %c0_20] : memref<1x4x2xf32, #tpu.memory_space<vmem>>, vector<1x4x1xf32>
    %35 = vector.shape_cast %34 : vector<1x4x1xf32> to vector<4x1xf32>
    %36 = vector.shape_cast %30 : vector<4x1xf32> to vector<1x4x1xf32>
    tpu.vector_store %arg5[%c0_18, %c0_19, %c0_20], %36 {strides = array<i32>} : memref<1x4x2xf32, #tpu.memory_space<vmem>>, vector<1x4x1xf32>,
    %c0_21 = arith.constant 0 : index
    %c0_22 = arith.constant 0 : index
    %c1 = arith.constant 1 : index
    %37 = vector.load %arg5[%c0_21, %c0_22, %c1] : memref<1x4x2xf32, #tpu.memory_space<vmem>>, vector<1x4x1xf32>
    %38 = vector.shape_cast %37 : vector<1x4x1xf32> to vector<4x1xf32>
    %39 = vector.shape_cast %33 : vector<4x1xf32> to vector<1x4x1xf32>
    tpu.vector_store %arg5[%c0_21, %c0_22, %c1], %39 {strides = array<i32>} : memref<1x4x2xf32, #tpu.memory_space<vmem>>, vector<1x4x1xf32>,
    return
  }
  func.func @transform_0(%arg0: i32) -> (i32, i32, i32) {
    %c0_i32 = arith.constant 0 : i32
    %c0_i32_0 = arith.constant 0 : i32
    %c0_i32_1 = arith.constant 0 : i32
    return %arg0, %c0_i32, %c0_i32_0 : i32, i32, i32
  }
  func.func @transform_1(%arg0: i32) -> (i32, i32) {
    %c0_i32 = arith.constant 0 : i32
    %c0_i32_0 = arith.constant 0 : i32
    %c0_i32_1 = arith.constant 0 : i32
    return %c0_i32, %c0_i32_0 : i32, i32
  }
  func.func @transform_2(%arg0: i32) -> (i32, i32) {
    %c0_i32 = arith.constant 0 : i32
    %c0_i32_0 = arith.constant 0 : i32
    %c0_i32_1 = arith.constant 0 : i32
    return %c0_i32, %c0_i32_0 : i32, i32
  }
  func.func @transform_3(%arg0: i32) -> (i32, i32, i32) {
    %c0_i32 = arith.constant 0 : i32
    %c0_i32_0 = arith.constant 0 : i32
    %c0_i32_1 = arith.constant 0 : i32
    return %arg0, %c0_i32, %c0_i32_0 : i32, i32, i32
  }
  func.func @transform_4(%arg0: i32) -> (i32, i32, i32) {
    %c0_i32 = arith.constant 0 : i32
    %c0_i32_0 = arith.constant 0 : i32
    %c0_i32_1 = arith.constant 0 : i32
    return %arg0, %c0_i32, %c0_i32_0 : i32, i32, i32
  }
}

module attributes {stable_mosaic.version = 11 : i64} {
  func.func @_bn_residual_kernel(%arg0: i32, %arg1: memref<8x256xf32, #tpu.memory_space<vmem>>, %arg2: memref<8x256xf32, #tpu.memory_space<vmem>>, %arg3: memref<8x2xf32, #tpu.memory_space<vmem>>, %arg4: memref<8x256xf32, #tpu.memory_space<vmem>>) attributes {dimension_semantics = [#tpu.dimension_semantics<parallel>], iteration_bounds = array<i64: 1>, scalar_prefetch = 0 : i64, scratch_operands = 0 : i64, tpu.core_type = #tpu.core_type<tc>, window_params = [{transform_indices = @transform_0, window_bounds = array<i64: 8, 256>}, {transform_indices = @transform_1, window_bounds = array<i64: 8, 256>}, {transform_indices = @transform_2, window_bounds = array<i64: 8, 2>}, {transform_indices = @transform_3, window_bounds = array<i64: 8, 256>}]} {
    %c0 = arith.constant 0 : index
    %c0_0 = arith.constant 0 : index
    %0 = vector.load %arg3[%c0, %c0_0] : memref<8x2xf32, #tpu.memory_space<vmem>>, vector<8x2xf32>
    %1 = vector.extract_strided_slice %0 {offsets = [0, 0], sizes = [8, 1], strides = [1, 1]} : vector<8x2xf32> to vector<8x1xf32>
    %2 = vector.extract_strided_slice %0 {offsets = [0, 1], sizes = [8, 1], strides = [1, 1]} : vector<8x2xf32> to vector<8x1xf32>
    %c0_1 = arith.constant 0 : index
    %c0_2 = arith.constant 0 : index
    %3 = vector.load %arg1[%c0_1, %c0_2] : memref<8x256xf32, #tpu.memory_space<vmem>>, vector<8x256xf32>
    %4 = vector.broadcast %1 : vector<8x1xf32> to vector<8x256xf32>
    %5 = arith.mulf %4, %3 : vector<8x256xf32>
    %6 = vector.broadcast %2 : vector<8x1xf32> to vector<8x256xf32>
    %7 = arith.addf %5, %6 : vector<8x256xf32>
    %c0_3 = arith.constant 0 : index
    %c0_4 = arith.constant 0 : index
    %8 = vector.load %arg2[%c0_3, %c0_4] : memref<8x256xf32, #tpu.memory_space<vmem>>, vector<8x256xf32>
    %9 = arith.addf %7, %8 : vector<8x256xf32>
    %c0_5 = arith.constant 0 : index
    %c0_6 = arith.constant 0 : index
    %10 = vector.load %arg4[%c0_5, %c0_6] : memref<8x256xf32, #tpu.memory_space<vmem>>, vector<8x256xf32>
    tpu.vector_store %arg4[%c0_5, %c0_6], %9 {strides = array<i32>} : memref<8x256xf32, #tpu.memory_space<vmem>>, vector<8x256xf32>,
    return
  }
  func.func @transform_0(%arg0: i32) -> (i32, i32) {
    %c0_i32 = arith.constant 0 : i32
    %c0_i32_0 = arith.constant 0 : i32
    return %arg0, %c0_i32 : i32, i32
  }
  func.func @transform_1(%arg0: i32) -> (i32, i32) {
    %c0_i32 = arith.constant 0 : i32
    %c0_i32_0 = arith.constant 0 : i32
    return %arg0, %c0_i32 : i32, i32
  }
  func.func @transform_2(%arg0: i32) -> (i32, i32) {
    %c0_i32 = arith.constant 0 : i32
    %c0_i32_0 = arith.constant 0 : i32
    return %arg0, %c0_i32 : i32, i32
  }
  func.func @transform_3(%arg0: i32) -> (i32, i32) {
    %c0_i32 = arith.constant 0 : i32
    %c0_i32_0 = arith.constant 0 : i32
    return %arg0, %c0_i32 : i32, i32
  }
}

</mosaic_0001>

<llo_original>
// kernel: nonlocal_block_pallas.3
$region0: #{nonlocal_block_pallas.3}
  #allocation0 [shape = 'u32[]', space=smem, size = 0x4, offset = 0x4, fixed_abs, tag = 'smem constant byte address 0x4 - core index']
  #allocation1 [shape = 'u32[72,128]{1,0:T(1,128)}', space=vmem, size = 0x9000, scoped, tag = 'internal scratch']
  %s0 = inlined_call_operand.vmem [shape: f32[8,256], index: 0, kind: input, shape index: {}, may-alias: {0,3}]
  %s1 = inlined_call_operand.vmem [shape: f32[8,256], index: 1, kind: input, shape index: {}]
  %s2 = inlined_call_operand.vmem [shape: f32[8,2], index: 2, kind: input, shape index: {}]
  %s3 = inlined_call_operand.vmem [shape: f32[8,256], index: 3, kind: output, shape index: {}, may-alias: {0,3}]
  %s4 = sld [smem:[#allocation0]]
  $region22: #{nonlocal_block_pallas.3} parent=0
    _
  %s6 = ssub.s32 1, %s4
  %s7 = scalar_select 0, %s6, %s4
  // Predicated region
  $region2: #{nonlocal_block_pallas.3} parent=0 // pred_check
    _
  $region3: #{nonlocal_block_pallas.3} parent=0 // pred_check_branch
    %9 = sbr.rel (0) target = $region5
  $region4: #{nonlocal_block_pallas.3} parent=0 // pred_region
    _
  $region5: #{nonlocal_block_pallas.3} parent=0 // pred_fallthru
    _
  // Predicated region
  $region6: #{nonlocal_block_pallas.3} parent=0 // pred_check
    _
  $region7: #{nonlocal_block_pallas.3} parent=0 // pred_check_branch
    %11 = sbr.rel (0) target = $region9
  $region8: #{nonlocal_block_pallas.3} parent=0 // pred_region
    _
  $region9: #{nonlocal_block_pallas.3} parent=0 // pred_fallthru
    _
  // Predicated region
  $region10: #{nonlocal_block_pallas.3} parent=0 // pred_check
    _
  $region11: #{nonlocal_block_pallas.3} parent=0 // pred_check_branch
    %13 = sbr.rel (0) target = $region13
  $region12: #{nonlocal_block_pallas.3} parent=0 // pred_region
    _
  $region13: #{nonlocal_block_pallas.3} parent=0 // pred_fallthru
    _
  %v14 = vld [vmem:[%s2] sm:$0xff]
  %v15 = vld [vmem:[%s0] sm:$0xff]
  %v16 = vld [vmem:[%s0 + $0x8] sm:$0xff]
  %18 = vset.pattern.permute.xlu0 0
  %19 = vperm.xlu0 %18, %v14
  %v20 = vpop.permute.xlu0 %19
  %v22 = vmul.f32 %v20, %v15
  %v23 = vmul.f32 %v20, %v16
  %24 = vset.pattern.permute.xlu0 1
  %25 = vperm.xlu0 %24, %v14
  %v26 = vpop.permute.xlu0 %25
  %v28 = vadd.f32 %v22, %v26
  %v29 = vadd.f32 %v23, %v26
  %v30 = vld [vmem:[%s1] sm:$0xff]
  %v31 = vld [vmem:[%s1 + $0x8] sm:$0xff]
  %v32 = vadd.f32 %v28, %v30
  %v33 = vadd.f32 %v29, %v31
  %34 = vst [vmem:[%s3] sm:$0xff] %v32
  %35 = vst [vmem:[%s3 + $0x8] sm:$0xff] %v33
  // Predicated region
  $region14: #{nonlocal_block_pallas.3} parent=0 // pred_check
    _
  $region15: #{nonlocal_block_pallas.3} parent=0 // pred_check_branch
    %37 = sbr.rel (0) target = $region17
  $region16: #{nonlocal_block_pallas.3} parent=0 // pred_region
    _
  $region17: #{nonlocal_block_pallas.3} parent=0 // pred_fallthru
    _
  // Predicated region
  $region18: #{nonlocal_block_pallas.3} parent=0 // pred_check
    _
  $region19: #{nonlocal_block_pallas.3} parent=0 // pred_check_branch
    %39 = sbr.rel (0) target = $region21
  $region20: #{nonlocal_block_pallas.3} parent=0 // pred_region
    _
  $region21: #{nonlocal_block_pallas.3} parent=0 // pred_fallthru
    _

// kernel: nonlocal_block_pallas.2
$region0: #{nonlocal_block_pallas.2}
  #allocation0 [shape = 'u32[]', space=smem, size = 0x4, offset = 0x4, fixed_abs, tag = 'smem constant byte address 0x4 - core index']
  #allocation1 [shape = 'u32[72,128]{1,0:T(1,128)}', space=vmem, size = 0x9000, scoped, tag = 'internal scratch']
  #allocation2 [shape = 'f32[2,256]{1,0:T(2,128)}', space=vmem, size = 0x800, scoped, tag = 'scratch operand']
  %s0 = inlined_call_operand.vmem [shape: f32[2,4,256], index: 0, kind: input, shape index: {}]
  %s1 = inlined_call_operand.vmem [shape: f32[4,5], index: 1, kind: input, shape index: {}]
  %s2 = inlined_call_operand.vmem [shape: f32[4,3], index: 2, kind: input, shape index: {}]
  %s3 = inlined_call_operand.vmem [shape: f32[2,4,256], index: 3, kind: output, shape index: {0}]
  %s4 = inlined_call_operand.vmem [shape: f32[2,4,2], index: 4, kind: output, shape index: {1}]
  %5 = xla_tuple %s3, %s4
  %s6 = sld [smem:[#allocation0]]
  $region53: #{nonlocal_block_pallas.2} parent=0
    _
  %s8 = ssub.s32 1, %s6
  %s9 = scalar_select 0, %s8, %s6
  loop: start=0, step=1, limit=4
  $region2: #{nonlocal_block_pallas.2} parent=0 // loop_pre_header
    _
  $region3: #{nonlocal_block_pallas.2} parent=0 // loop_header
    %s11 = sphi 0, %s15
    %p12 = scmp.ge.s32.totalorder %s11, 4
    %s21 = sphi 0, %s23
    %s24 = sphi 0, %s21
    %s25 = sphi 0, %s24
    %s41 = sphi 0, %s25
    %s45 = sphi 0, %s45
    %s47 = sphi 0, %s45
    %s48 = sphi 0, %s47
    %s62 = sphi 0, %s48
    %s66 = sphi 0, %s66
    %s68 = sphi 0, %s66
    %s69 = sphi 0, %s68
    %s83 = sphi 0, %s69
    %s89 = sphi 0, %s91
    %s92 = sphi 0, %s89
    %s93 = sphi 0, %s92
    %s109 = sphi 0, %s93
    %s115 = sphi 0, %s117
    %s118 = sphi 0, %s115
    %s119 = sphi 0, %s118
    %s135 = sphi 0, %s119
  $region4: #{nonlocal_block_pallas.2} parent=0 // loop_header_branch
    %14 = sbr.rel (%p12) target = $region8
  $region5: #{nonlocal_block_pallas.2} parent=0 // loop_body
    %s16 = ssub.s32 %s11, 1
    %s17 = ssub.s32 %s11, 2
    %s18 = sadd.s32 %s11, 1
    %s19 = ssub.s32 %s11, %s18
    %p20 = scmp.eq.s32.totalorder %s19, 0
    %s22 = sadd.s32 %s21, 1
    %s23 = scalar_select %p20, %s21, %s22
    %p26 = pneg %p20
    %p27 = scmp.eq.s32.totalorder %s11, 1
    %p28 = por %p26, %p27
    %p29 = scmp.ne.s32.totalorder %s21, %s24
    %p30 = scmp.eq.s32.totalorder %s11, 0
    %p31 = por %p29, %p30
    %p32 = scmp.ne.s32.totalorder %s21, %s24
    %p33 = scmp.eq.s32.totalorder %s16, 1
    %p34 = por %p32, %p33
    %p35 = scmp.ne.s32.totalorder %s24, %s25
    %p36 = scmp.eq.s32.totalorder %s16, 0
    %p37 = por %p35, %p36
    %p38 = scmp.ne.s32.totalorder %s24, %s25
    %p39 = scmp.eq.s32.totalorder %s17, 1
    %p40 = por %p38, %p39
    %p42 = scmp.ne.s32.totalorder %s25, %s41
    %p43 = scmp.eq.s32.totalorder %s17, 0
    %p44 = por %p42, %p43
    %s46 = sadd.s32 %s45, 1
    %p49 = scmp.eq.s32.totalorder %s11, 1
    %p50 = scmp.ne.s32.totalorder %s45, %s47
    %p51 = scmp.eq.s32.totalorder %s11, 0
    %p52 = por %p50, %p51
    %p53 = scmp.ne.s32.totalorder %s45, %s47
    %p54 = scmp.eq.s32.totalorder %s16, 1
    %p55 = por %p53, %p54
    %p56 = scmp.ne.s32.totalorder %s47, %s48
    %p57 = scmp.eq.s32.totalorder %s16, 0
    %p58 = por %p56, %p57
    %p59 = scmp.ne.s32.totalorder %s47, %s48
    %p60 = scmp.eq.s32.totalorder %s17, 1
    %p61 = por %p59, %p60
    %p63 = scmp.ne.s32.totalorder %s48, %s62
    %p64 = scmp.eq.s32.totalorder %s17, 0
    %p65 = por %p63, %p64
    %s67 = sadd.s32 %s66, 1
    %p70 = scmp.eq.s32.totalorder %s11, 1
    %p71 = scmp.ne.s32.totalorder %s66, %s68
    %p72 = scmp.eq.s32.totalorder %s11, 0
    %p73 = por %p71, %p72
    %p74 = scmp.ne.s32.totalorder %s66, %s68
    %p75 = scmp.eq.s32.totalorder %s16, 1
    %p76 = por %p74, %p75
    %p77 = scmp.ne.s32.totalorder %s68, %s69
    %p78 = scmp.eq.s32.totalorder %s16, 0
    %p79 = por %p77, %p78
    %p80 = scmp.ne.s32.totalorder %s68, %s69
    %p81 = scmp.eq.s32.totalorder %s17, 1
    %p82 = por %p80, %p81
    %p84 = scmp.ne.s32.totalorder %s69, %s83
    %p85 = scmp.eq.s32.totalorder %s17, 0
    %p86 = por %p84, %p85
    %s87 = ssub.s32 %s11, %s18
    %p88 = scmp.eq.s32.totalorder %s87, 0
    %s90 = sadd.s32 %s89, 1
    %s91 = scalar_select %p88, %s89, %s90
    %p94 = pneg %p88
    %p95 = scmp.eq.s32.totalorder %s11, 1
    %p96 = por %p94, %p95
    %p97 = scmp.ne.s32.totalorder %s89, %s92
    %p98 = scmp.eq.s32.totalorder %s11, 0
    %p99 = por %p97, %p98
    %p100 = scmp.ne.s32.totalorder %s89, %s92
    %p101 = scmp.eq.s32.totalorder %s16, 1
    %p102 = por %p100, %p101
    %p103 = scmp.ne.s32.totalorder %s92, %s93
    %p104 = scmp.eq.s32.totalorder %s16, 0
    %p105 = por %p103, %p104
    %p106 = scmp.ne.s32.totalorder %s92, %s93
    %p107 = scmp.eq.s32.totalorder %s17, 1
    %p108 = por %p106, %p107
    %p110 = scmp.ne.s32.totalorder %s93, %s109
    %p111 = scmp.eq.s32.totalorder %s17, 0
    %p112 = por %p110, %p111
    %s113 = ssub.s32 %s11, %s18
    %p114 = scmp.eq.s32.totalorder %s113, 0
    %s116 = sadd.s32 %s115, 1
    %s117 = scalar_select %p114, %s115, %s116
    %p120 = pneg %p114
    %p121 = scmp.eq.s32.totalorder %s11, 1
    %p122 = por %p120, %p121
    %p123 = scmp.ne.s32.totalorder %s115, %s118
    %p124 = scmp.eq.s32.totalorder %s11, 0
    %p125 = por %p123, %p124
    %p126 = scmp.ne.s32.totalorder %s115, %s118
    %p127 = scmp.eq.s32.totalorder %s16, 1
    %p128 = por %p126, %p127
    %p129 = scmp.ne.s32.totalorder %s118, %s119
    %p130 = scmp.eq.s32.totalorder %s16, 0
    %p131 = por %p129, %p130
    %p132 = scmp.ne.s32.totalorder %s118, %s119
    %p133 = scmp.eq.s32.totalorder %s17, 1
    %p134 = por %p132, %p133
    %p136 = scmp.ne.s32.totalorder %s119, %s135
    %p137 = scmp.eq.s32.totalorder %s17, 0
    %p138 = por %p136, %p137
    %p139 = scmp.le.s32.totalorder 1, %s11
    %p140 = scmp.lt.s32.totalorder %s11, 3
    %p141 = pnand %p139, %p140
    %p142 = pneg %p141
    // Predicated region
    $region9: #{nonlocal_block_pallas.2} parent=5 // pred_check
      _
    $region10: #{nonlocal_block_pallas.2} parent=5 // pred_check_branch
      %144 = sbr.rel (%p141) target = $region12
    $region11: #{nonlocal_block_pallas.2} parent=5 // pred_region
      %s145 = ssub.s32 %s11, 1
      // Predicated region
      $region13: #{nonlocal_block_pallas.2} parent=11 // pred_check
        %p146 = pneg %p58
      $region14: #{nonlocal_block_pallas.2} parent=11 // pred_check_branch
        %148 = sbr.rel (%p146) target = $region16
      $region15: #{nonlocal_block_pallas.2} parent=11 // pred_region
        _
      $region16: #{nonlocal_block_pallas.2} parent=11 // pred_fallthru
        _
      // Predicated region
      $region17: #{nonlocal_block_pallas.2} parent=11 // pred_check
        %p149 = pneg %p79
      $region18: #{nonlocal_block_pallas.2} parent=11 // pred_check_branch
        %151 = sbr.rel (%p149) target = $region20
      $region19: #{nonlocal_block_pallas.2} parent=11 // pred_region
        _
      $region20: #{nonlocal_block_pallas.2} parent=11 // pred_fallthru
        _
    $region12: #{nonlocal_block_pallas.2} parent=5 // pred_fallthru
      _
    %p152 = scmp.lt.s32.totalorder %s11, 2
    // Predicated region
    $region21: #{nonlocal_block_pallas.2} parent=5 // pred_check
      %p153 = pneg %p152
    $region22: #{nonlocal_block_pallas.2} parent=5 // pred_check_branch
      %155 = sbr.rel (%p153) target = $region24
    $region23: #{nonlocal_block_pallas.2} parent=5 // pred_region
      // Predicated region
      $region25: #{nonlocal_block_pallas.2} parent=23 // pred_check
        %p156 = pneg %p31
      $region26: #{nonlocal_block_pallas.2} parent=23 // pred_check_branch
        %158 = sbr.rel (%p156) target = $region28
      $region27: #{nonlocal_block_pallas.2} parent=23 // pred_region
        %p159 = scmp.lt.s32.totalorder %s11, 1
        %s160 = scalar_select %p159, %s11, 1
        %s161 = smul.addr %s160, 2
        %s162 = smul.addr %s161, 4
        %s163 = scalar_lea.vmem %s0, %s162
      $region28: #{nonlocal_block_pallas.2} parent=23 // pred_fallthru
        _
    $region24: #{nonlocal_block_pallas.2} parent=5 // pred_fallthru
      _
    %p164 = scmp.le.s32.totalorder 1, %s11
    %p165 = scmp.lt.s32.totalorder %s11, 3
    %p166 = pnand %p164, %p165
    %p167 = pneg %p166
    // Predicated region
    $region29: #{nonlocal_block_pallas.2} parent=5 // pred_check
      _
    $region30: #{nonlocal_block_pallas.2} parent=5 // pred_check_branch
      %169 = sbr.rel (%p166) target = $region32
    $region31: #{nonlocal_block_pallas.2} parent=5 // pred_region
      %s170 = ssub.s32 %s11, 1
      %p171 = scmp.lt.s32.totalorder %s16, 1
      %s172 = scalar_select %p171, %s16, 1
      %s173 = smul.addr %s172, 2
      %s174 = smul.addr %s173, 4
      %s175 = scalar_lea.vmem %s0, %s174
      %p176 = pneg %p37
      %p177 = pneg %p34
      %p178 = pneg %p58
      %p179 = pneg %p55
      %p180 = pneg %p79
      %p181 = pneg %p76
      %p182 = pneg %p105
      %p183 = pneg %p102
      %p184 = scmp.lt.s32.totalorder %s16, 1
      %s185 = scalar_select %p184, %s16, 1
      %s186 = smul.addr %s185, 2
      %s187 = smul.addr %s186, 4
      %s188 = scalar_lea.vmem %s3, %s187
      %p189 = pneg %p131
      %p190 = pneg %p128
      %p191 = scmp.lt.s32.totalorder %s16, 1
      %s192 = scalar_select %p191, %s16, 1
      %s193 = smul.addr %s192, 4
      %s194 = scalar_lea.vmem %s4, %s193
      %p195 = scmp.lt.s32.totalorder %s16, 1
      %s196 = scalar_select %p195, %s16, 1
      %s197 = smul.addr %s196, 2
      %s198 = smul.addr %s197, 4
      %s199 = scalar_lea.vmem %s0, %s198
      %p200 = scmp.lt.s32.totalorder %s16, 1
      %s201 = scalar_select %p200, %s16, 1
      %s202 = smul.addr %s201, 2
      %s203 = smul.addr %s202, 4
      %s204 = scalar_lea.vmem %s3, %s203
      %p205 = scmp.lt.s32.totalorder %s16, 1
      %s206 = scalar_select %p205, %s16, 1
      %s207 = smul.addr %s206, 4
      %s208 = scalar_lea.vmem %s4, %s207
      %v209 = vld [vmem:[%s199] sm:$0xff]
      %v210 = vld [vmem:[%s1] sm:$0xf]
      %212 = vset.pattern.permute.xlu0 4
      %213 = vperm.xlu0 %212, %v210
      %v214 = vpop.permute.xlu0 %213
      %217 = vst [vmem:[#allocation1] ss:$2 sm:$0xff] %v209
      %v218 = vld.sshfl [vmem:[#allocation1] sm:$0xff pattern:$0x75316420]
      %v219 = vld.sshfl [vmem:[#allocation1 + $0x8] sm:$0xff pattern:$0x75316420]
      %vm220 = vcmask 31744
      %v221 = vsel %vm220, %v210, 0
      %vm223 = vcmask 1043456
      %v224 = vsel %vm223, %v218, 0
      %v226 = vsel %vm223, %v219, 0
      %228 = vmatpush.msra.mxu0 0.0
      %229 = vmatpush.msra.mxu0 0.0
      %230 = vmatpush.msra.mxu0 0.0
      %231 = vmatpush.msra.mxu0 0.0
      %232 = vmatpush.msra.mxu0 0.0
      %233 = vmatpush.msra.mxu0 0.0
      %234 = vmatpush.msra.mxu0 0.0
      %235 = vmatpush.msra.mxu0 0.0
      %236 = vmatpush.msra.mxu0 0.0
      %237 = vmatpush.msra.mxu0 0.0
      %238 = vmatpush.msra.mxu0 0.0
      %239 = vmatpush.msra.mxu0 0.0
      %240 = vmatpush.msra.mxu0 0.0
      %241 = vmatpush.msra.mxu0 0.0
      %242 = vmatpush.msra.mxu0 0.0
      %243 = vmatpush.msra.mxu0 %v224
      %244 = vmatmul.f32.gmra.mxu0 %v221
      %v245 = vpop.f32.mrf.mxu0
      %v246 = vadd.f32 %v214, %v245
      %247 = vdwg.mxu0
      %248 = vmatpush.msra.mxu0 0.0
      %249 = vmatpush.msra.mxu0 0.0
      %250 = vmatpush.msra.mxu0 0.0
      %251 = vmatpush.msra.mxu0 0.0
      %252 = vmatpush.msra.mxu0 0.0
      %253 = vmatpush.msra.mxu0 0.0
      %254 = vmatpush.msra.mxu0 0.0
      %255 = vmatpush.msra.mxu0 0.0
      %256 = vmatpush.msra.mxu0 0.0
      %257 = vmatpush.msra.mxu0 0.0
      %258 = vmatpush.msra.mxu0 0.0
      %259 = vmatpush.msra.mxu0 0.0
      %260 = vmatpush.msra.mxu0 0.0
      %261 = vmatpush.msra.mxu0 0.0
      %262 = vmatpush.msra.mxu0 0.0
      %263 = vmatpush.msra.mxu0 %v226
      %264 = vmatmul.f32.gmra.mxu0 %v221
      %v265 = vpop.f32.mrf.mxu0
      %v266 = vadd.f32 %v214, %v265
      %267 = vdwg.mxu0
      %v270 = vrot.slane %v246, 3
      %v271 = vrot.slane %v266, 3
      %274 = vxpose.xlu0.b32.start [1/16] %v270, 128
      %275 = vxpose.xlu0.b32.cont [2/16] 0.0, 128
      %276 = vxpose.xlu0.b32.cont [3/16] 0.0, 128
      %277 = vxpose.xlu0.b32.cont [4/16] 0.0, 128
      %278 = vxpose.xlu0.b32.cont [5/16] 0.0, 128
      %279 = vxpose.xlu0.b32.cont [6/16] 0.0, 128
      %280 = vxpose.xlu0.b32.cont [7/16] 0.0, 128
      %281 = vxpose.xlu0.b32.cont [8/16] 0.0, 128
      %282 = vxpose.xlu0.b32.cont [9/16] 0.0, 128
      %283 = vxpose.xlu0.b32.cont [10/16] 0.0, 128
      %284 = vxpose.xlu0.b32.cont [11/16] 0.0, 128
      %285 = vxpose.xlu0.b32.cont [12/16] 0.0, 128
      %286 = vxpose.xlu0.b32.cont [13/16] 0.0, 128
      %287 = vxpose.xlu0.b32.cont [14/16] 0.0, 128
      %288 = vxpose.xlu0.b32.cont [15/16] 0.0, 128
      %289 = vxpose.xlu0.b32.end [16/16] 0.0, 128
      %v290 = vpop.trf.xlu0
      %v291 = vpop.trf.xlu0
      %v292 = vpop.trf.xlu0
      %v293 = vpop.trf.xlu0
      %v294 = vpop.trf.xlu0
      %v295 = vpop.trf.xlu0
      %v296 = vpop.trf.xlu0
      %v297 = vpop.trf.xlu0
      %v298 = vpop.trf.xlu0
      %v299 = vpop.trf.xlu0
      %v300 = vpop.trf.xlu0
      %v301 = vpop.trf.xlu0
      %v302 = vpop.trf.xlu0
      %v303 = vpop.trf.xlu0
      %v304 = vpop.trf.xlu0
      %v305 = vpop.trf.xlu0
      %306 = vxpose.xlu0.b32.start [1/16] %v271, 128
      %307 = vxpose.xlu0.b32.cont [2/16] 0.0, 128
      %308 = vxpose.xlu0.b32.cont [3/16] 0.0, 128
      %309 = vxpose.xlu0.b32.cont [4/16] 0.0, 128
      %310 = vxpose.xlu0.b32.cont [5/16] 0.0, 128
      %311 = vxpose.xlu0.b32.cont [6/16] 0.0, 128
      %312 = vxpose.xlu0.b32.cont [7/16] 0.0, 128
      %313 = vxpose.xlu0.b32.cont [8/16] 0.0, 128
      %314 = vxpose.xlu0.b32.cont [9/16] 0.0, 128
      %315 = vxpose.xlu0.b32.cont [10/16] 0.0, 128
      %316 = vxpose.xlu0.b32.cont [11/16] 0.0, 128
      %317 = vxpose.xlu0.b32.cont [12/16] 0.0, 128
      %318 = vxpose.xlu0.b32.cont [13/16] 0.0, 128
      %319 = vxpose.xlu0.b32.cont [14/16] 0.0, 128
      %320 = vxpose.xlu0.b32.cont [15/16] 0.0, 128
      %321 = vxpose.xlu0.b32.end [16/16] 0.0, 128
      %v322 = vpop.trf.xlu0
      %v323 = vpop.trf.xlu0
      %v324 = vpop.trf.xlu0
      %v325 = vpop.trf.xlu0
      %v326 = vpop.trf.xlu0
      %v327 = vpop.trf.xlu0
      %v328 = vpop.trf.xlu0
      %v329 = vpop.trf.xlu0
      %v330 = vpop.trf.xlu0
      %v331 = vpop.trf.xlu0
      %v332 = vpop.trf.xlu0
      %v333 = vpop.trf.xlu0
      %v334 = vpop.trf.xlu0
      %v335 = vpop.trf.xlu0
      %v336 = vpop.trf.xlu0
      %v337 = vpop.trf.xlu0
      %339 = vset.pattern.permute.xlu0 0
      %340 = vperm.xlu0 %339, %v290
      %v341 = vpop.permute.xlu0 %340
      %344 = vset.pattern.permute.xlu0 0
      %345 = vperm.xlu0 %344, %v291
      %v346 = vpop.permute.xlu0 %345
      %349 = vset.pattern.permute.xlu0 0
      %350 = vperm.xlu0 %349, %v292
      %v351 = vpop.permute.xlu0 %350
      %354 = vset.pattern.permute.xlu0 0
      %355 = vperm.xlu0 %354, %v293
      %v356 = vpop.permute.xlu0 %355
      %359 = vset.pattern.permute.xlu0 0
      %360 = vperm.xlu0 %359, %v294
      %v361 = vpop.permute.xlu0 %360
      %364 = vset.pattern.permute.xlu0 0
      %365 = vperm.xlu0 %364, %v295
      %v366 = vpop.permute.xlu0 %365
      %369 = vset.pattern.permute.xlu0 0
      %370 = vperm.xlu0 %369, %v296
      %v371 = vpop.permute.xlu0 %370
      %374 = vset.pattern.permute.xlu0 0
      %375 = vperm.xlu0 %374, %v297
      %v376 = vpop.permute.xlu0 %375
      %379 = vset.pattern.permute.xlu0 0
      %380 = vperm.xlu0 %379, %v298
      %v381 = vpop.permute.xlu0 %380
      %384 = vset.pattern.permute.xlu0 0
      %385 = vperm.xlu0 %384, %v299
      %v386 = vpop.permute.xlu0 %385
      %389 = vset.pattern.permute.xlu0 0
      %390 = vperm.xlu0 %389, %v300
      %v391 = vpop.permute.xlu0 %390
      %394 = vset.pattern.permute.xlu0 0
      %395 = vperm.xlu0 %394, %v301
      %v396 = vpop.permute.xlu0 %395
      %399 = vset.pattern.permute.xlu0 0
      %400 = vperm.xlu0 %399, %v302
      %v401 = vpop.permute.xlu0 %400
      %404 = vset.pattern.permute.xlu0 0
      %405 = vperm.xlu0 %404, %v303
      %v406 = vpop.permute.xlu0 %405
      %409 = vset.pattern.permute.xlu0 0
      %410 = vperm.xlu0 %409, %v304
      %v411 = vpop.permute.xlu0 %410
      %414 = vset.pattern.permute.xlu0 0
      %415 = vperm.xlu0 %414, %v305
      %v416 = vpop.permute.xlu0 %415
      %419 = vset.pattern.permute.xlu0 0
      %420 = vperm.xlu0 %419, %v322
      %v421 = vpop.permute.xlu0 %420
      %424 = vset.pattern.permute.xlu0 0
      %425 = vperm.xlu0 %424, %v323
      %v426 = vpop.permute.xlu0 %425
      %429 = vset.pattern.permute.xlu0 0
      %430 = vperm.xlu0 %429, %v324
      %v431 = vpop.permute.xlu0 %430
      %434 = vset.pattern.permute.xlu0 0
      %435 = vperm.xlu0 %434, %v325
      %v436 = vpop.permute.xlu0 %435
      %439 = vset.pattern.permute.xlu0 0
      %440 = vperm.xlu0 %439, %v326
      %v441 = vpop.permute.xlu0 %440
      %444 = vset.pattern.permute.xlu0 0
      %445 = vperm.xlu0 %444, %v327
      %v446 = vpop.permute.xlu0 %445
      %449 = vset.pattern.permute.xlu0 0
      %450 = vperm.xlu0 %449, %v328
      %v451 = vpop.permute.xlu0 %450
      %454 = vset.pattern.permute.xlu0 0
      %455 = vperm.xlu0 %454, %v329
      %v456 = vpop.permute.xlu0 %455
      %459 = vset.pattern.permute.xlu0 0
      %460 = vperm.xlu0 %459, %v330
      %v461 = vpop.permute.xlu0 %460
      %464 = vset.pattern.permute.xlu0 0
      %465 = vperm.xlu0 %464, %v331
      %v466 = vpop.permute.xlu0 %465
      %469 = vset.pattern.permute.xlu0 0
      %470 = vperm.xlu0 %469, %v332
      %v471 = vpop.permute.xlu0 %470
      %474 = vset.pattern.permute.xlu0 0
      %475 = vperm.xlu0 %474, %v333
      %v476 = vpop.permute.xlu0 %475
      %479 = vset.pattern.permute.xlu0 0
      %480 = vperm.xlu0 %479, %v334
      %v481 = vpop.permute.xlu0 %480
      %484 = vset.pattern.permute.xlu0 0
      %485 = vperm.xlu0 %484, %v335
      %v486 = vpop.permute.xlu0 %485
      %489 = vset.pattern.permute.xlu0 0
      %490 = vperm.xlu0 %489, %v336
      %v491 = vpop.permute.xlu0 %490
      %494 = vset.pattern.permute.xlu0 0
      %495 = vperm.xlu0 %494, %v337
      %v496 = vpop.permute.xlu0 %495
      %v498 = vperm.slane %v246, 2
      %v499 = vperm.slane %v266, 2
      %v500 = vadd.f32 %v341, %v498
      %v501 = vadd.f32 %v341, %v499
      %v502 = vadd.f32 %v346, %v498
      %v503 = vadd.f32 %v346, %v499
      %v504 = vadd.f32 %v351, %v498
      %v505 = vadd.f32 %v351, %v499
      %v506 = vadd.f32 %v356, %v498
      %v507 = vadd.f32 %v356, %v499
      %v508 = vadd.f32 %v361, %v498
      %v509 = vadd.f32 %v361, %v499
      %v510 = vadd.f32 %v366, %v498
      %v511 = vadd.f32 %v366, %v499
      %v512 = vadd.f32 %v371, %v498
      %v513 = vadd.f32 %v371, %v499
      %v514 = vadd.f32 %v376, %v498
      %v515 = vadd.f32 %v376, %v499
      %v516 = vadd.f32 %v381, %v498
      %v517 = vadd.f32 %v381, %v499
      %v518 = vadd.f32 %v386, %v498
      %v519 = vadd.f32 %v386, %v499
      %v520 = vadd.f32 %v391, %v498
      %v521 = vadd.f32 %v391, %v499
      %v522 = vadd.f32 %v396, %v498
      %v523 = vadd.f32 %v396, %v499
      %v524 = vadd.f32 %v401, %v498
      %v525 = vadd.f32 %v401, %v499
      %v526 = vadd.f32 %v406, %v498
      %v527 = vadd.f32 %v406, %v499
      %v528 = vadd.f32 %v411, %v498
      %v529 = vadd.f32 %v411, %v499
      %v530 = vadd.f32 %v416, %v498
      %v531 = vadd.f32 %v416, %v499
      %v532 = vadd.f32 %v421, %v498
      %v533 = vadd.f32 %v421, %v499
      %v534 = vadd.f32 %v426, %v498
      %v535 = vadd.f32 %v426, %v499
      %v536 = vadd.f32 %v431, %v498
      %v537 = vadd.f32 %v431, %v499
      %v538 = vadd.f32 %v436, %v498
      %v539 = vadd.f32 %v436, %v499
      %v540 = vadd.f32 %v441, %v498
      %v541 = vadd.f32 %v441, %v499
      %v542 = vadd.f32 %v446, %v498
      %v543 = vadd.f32 %v446, %v499
      %v544 = vadd.f32 %v451, %v498
      %v545 = vadd.f32 %v451, %v499
      %v546 = vadd.f32 %v456, %v498
      %v547 = vadd.f32 %v456, %v499
      %v548 = vadd.f32 %v461, %v498
      %v549 = vadd.f32 %v461, %v499
      %v550 = vadd.f32 %v466, %v498
      %v551 = vadd.f32 %v466, %v499
      %v552 = vadd.f32 %v471, %v498
      %v553 = vadd.f32 %v471, %v499
      %v554 = vadd.f32 %v476, %v498
      %v555 = vadd.f32 %v476, %v499
      %v556 = vadd.f32 %v481, %v498
      %v557 = vadd.f32 %v481, %v499
      %v558 = vadd.f32 %v486, %v498
      %v559 = vadd.f32 %v486, %v499
      %v560 = vadd.f32 %v491, %v498
      %v561 = vadd.f32 %v491, %v499
      %v562 = vadd.f32 %v496, %v498
      %v563 = vadd.f32 %v496, %v499
      %v564 = vmax.f32 %v500, 0.0
      %v565 = vmax.f32 %v501, 0.0
      %v566 = vmax.f32 %v502, 0.0
      %v567 = vmax.f32 %v503, 0.0
      %v568 = vmax.f32 %v504, 0.0
      %v569 = vmax.f32 %v505, 0.0
      %v570 = vmax.f32 %v506, 0.0
      %v571 = vmax.f32 %v507, 0.0
      %v572 = vmax.f32 %v508, 0.0
      %v573 = vmax.f32 %v509, 0.0
      %v574 = vmax.f32 %v510, 0.0
      %v575 = vmax.f32 %v511, 0.0
      %v576 = vmax.f32 %v512, 0.0
      %v577 = vmax.f32 %v513, 0.0
      %v578 = vmax.f32 %v514, 0.0
      %v579 = vmax.f32 %v515, 0.0
      %v580 = vmax.f32 %v516, 0.0
      %v581 = vmax.f32 %v517, 0.0
      %v582 = vmax.f32 %v518, 0.0
      %v583 = vmax.f32 %v519, 0.0
      %v584 = vmax.f32 %v520, 0.0
      %v585 = vmax.f32 %v521, 0.0
      %v586 = vmax.f32 %v522, 0.0
      %v587 = vmax.f32 %v523, 0.0
      %v588 = vmax.f32 %v524, 0.0
      %v589 = vmax.f32 %v525, 0.0
      %v590 = vmax.f32 %v526, 0.0
      %v591 = vmax.f32 %v527, 0.0
      %v592 = vmax.f32 %v528, 0.0
      %v593 = vmax.f32 %v529, 0.0
      %v594 = vmax.f32 %v530, 0.0
      %v595 = vmax.f32 %v531, 0.0
      %v596 = vmax.f32 %v532, 0.0
      %v597 = vmax.f32 %v533, 0.0
      %v598 = vmax.f32 %v534, 0.0
      %v599 = vmax.f32 %v535, 0.0
      %v600 = vmax.f32 %v536, 0.0
      %v601 = vmax.f32 %v537, 0.0
      %v602 = vmax.f32 %v538, 0.0
      %v603 = vmax.f32 %v539, 0.0
      %v604 = vmax.f32 %v540, 0.0
      %v605 = vmax.f32 %v541, 0.0
      %v606 = vmax.f32 %v542, 0.0
      %v607 = vmax.f32 %v543, 0.0
      %v608 = vmax.f32 %v544, 0.0
      %v609 = vmax.f32 %v545, 0.0
      %v610 = vmax.f32 %v546, 0.0
      %v611 = vmax.f32 %v547, 0.0
      %v612 = vmax.f32 %v548, 0.0
      %v613 = vmax.f32 %v549, 0.0
      %v614 = vmax.f32 %v550, 0.0
      %v615 = vmax.f32 %v551, 0.0
      %v616 = vmax.f32 %v552, 0.0
      %v617 = vmax.f32 %v553, 0.0
      %v618 = vmax.f32 %v554, 0.0
      %v619 = vmax.f32 %v555, 0.0
      %v620 = vmax.f32 %v556, 0.0
      %v621 = vmax.f32 %v557, 0.0
      %v622 = vmax.f32 %v558, 0.0
      %v623 = vmax.f32 %v559, 0.0
      %v624 = vmax.f32 %v560, 0.0
      %v625 = vmax.f32 %v561, 0.0
      %v626 = vmax.f32 %v562, 0.0
      %v627 = vmax.f32 %v563, 0.0
      %628 = vmatpush.msra.mxu0 %v594
      %629 = vmatpush.msra.mxu0 %v592
      %630 = vmatpush.msra.mxu0 %v590
      %631 = vmatpush.msra.mxu0 %v588
      %632 = vmatpush.msra.mxu0 %v586
      %633 = vmatpush.msra.mxu0 %v584
      %634 = vmatpush.msra.mxu0 %v582
      %635 = vmatpush.msra.mxu0 %v580
      %636 = vmatpush.msra.mxu0 %v578
      %637 = vmatpush.msra.mxu0 %v576
      %638 = vmatpush.msra.mxu0 %v574
      %639 = vmatpush.msra.mxu0 %v572
      %640 = vmatpush.msra.mxu0 %v570
      %641 = vmatpush.msra.mxu0 %v568
      %642 = vmatpush.msra.mxu0 %v566
      %643 = vmatpush.msra.mxu0 %v564
      %644 = vmatmul.f32.gmra.mxu0 %v246
      %v645 = vpop.f32.mrf.mxu0
      %v646 = vadd.f32 0.0, %v645
      %647 = vdwg.mxu0
      %648 = vmatpush.msra.mxu0 %v626
      %649 = vmatpush.msra.mxu0 %v624
      %650 = vmatpush.msra.mxu0 %v622
      %651 = vmatpush.msra.mxu0 %v620
      %652 = vmatpush.msra.mxu0 %v618
      %653 = vmatpush.msra.mxu0 %v616
      %654 = vmatpush.msra.mxu0 %v614
      %655 = vmatpush.msra.mxu0 %v612
      %656 = vmatpush.msra.mxu0 %v610
      %657 = vmatpush.msra.mxu0 %v608
      %658 = vmatpush.msra.mxu0 %v606
      %659 = vmatpush.msra.mxu0 %v604
      %660 = vmatpush.msra.mxu0 %v602
      %661 = vmatpush.msra.mxu0 %v600
      %662 = vmatpush.msra.mxu0 %v598
      %663 = vmatpush.msra.mxu0 %v596
      %664 = vmatmul.f32.gmra.mxu0 %v266
      %v665 = vpop.f32.mrf.mxu0
      %v666 = vadd.f32 %v646, %v665
      %667 = vdwg.mxu0
      %668 = vmatpush.msra.mxu0 %v595
      %669 = vmatpush.msra.mxu0 %v593
      %670 = vmatpush.msra.mxu0 %v591
      %671 = vmatpush.msra.mxu0 %v589
      %672 = vmatpush.msra.mxu0 %v587
      %673 = vmatpush.msra.mxu0 %v585
      %674 = vmatpush.msra.mxu0 %v583
      %675 = vmatpush.msra.mxu0 %v581
      %676 = vmatpush.msra.mxu0 %v579
      %677 = vmatpush.msra.mxu0 %v577
      %678 = vmatpush.msra.mxu0 %v575
      %679 = vmatpush.msra.mxu0 %v573
      %680 = vmatpush.msra.mxu0 %v571
      %681 = vmatpush.msra.mxu0 %v569
      %682 = vmatpush.msra.mxu0 %v567
      %683 = vmatpush.msra.mxu0 %v565
      %684 = vmatmul.f32.gmra.mxu0 %v246
      %v685 = vpop.f32.mrf.mxu0
      %v686 = vadd.f32 0.0, %v685
      %687 = vdwg.mxu0
      %688 = vmatpush.msra.mxu0 %v627
      %689 = vmatpush.msra.mxu0 %v625
      %690 = vmatpush.msra.mxu0 %v623
      %691 = vmatpush.msra.mxu0 %v621
      %692 = vmatpush.msra.mxu0 %v619
      %693 = vmatpush.msra.mxu0 %v617
      %694 = vmatpush.msra.mxu0 %v615
      %695 = vmatpush.msra.mxu0 %v613
      %696 = vmatpush.msra.mxu0 %v611
      %697 = vmatpush.msra.mxu0 %v609
      %698 = vmatpush.msra.mxu0 %v607
      %699 = vmatpush.msra.mxu0 %v605
      %700 = vmatpush.msra.mxu0 %v603
      %701 = vmatpush.msra.mxu0 %v601
      %702 = vmatpush.msra.mxu0 %v599
      %703 = vmatpush.msra.mxu0 %v597
      %704 = vmatmul.f32.gmra.mxu0 %v266
      %v705 = vpop.f32.mrf.mxu0
      %v706 = vadd.f32 %v686, %v705
      %707 = vdwg.mxu0
      %v710 = vrot.slane %v706, 6
      %vm711 = vcmask 1041408
      %v712 = vsel %vm711, %v666, %v710
      %714 = vst [vmem:[#allocation2] sm:$0xf] %v712
      %v715 = vld [vmem:[%s2] sm:$0xf]
      %v716 = vld [vmem:[#allocation2] sm:$0xf]
      %718 = vset.pattern.permute.xlu0 2
      %719 = vperm.xlu0 %718, %v715
      %v720 = vpop.permute.xlu0 %719
      %723 = vst [vmem:[#allocation1] ss:$4 sm:$0xff] %v716
      %v724 = vld.sshfl [vmem:[#allocation1] sm:$0xff pattern:$0x73625140]
      %v725 = vld.sshfl [vmem:[#allocation1 + $0x8] sm:$0xff pattern:$0x73625140]
      %vm726 = vcmask 15360
      %v727 = vsel %vm726, %v715, 0
      %v729 = vsel %vm711, %v724, 0
      %v731 = vsel %vm711, %v725, 0
      %733 = vmatpush.msra.mxu0 0.0
      %734 = vmatpush.msra.mxu0 0.0
      %735 = vmatpush.msra.mxu0 0.0
      %736 = vmatpush.msra.mxu0 0.0
      %737 = vmatpush.msra.mxu0 0.0
      %738 = vmatpush.msra.mxu0 0.0
      %739 = vmatpush.msra.mxu0 0.0
      %740 = vmatpush.msra.mxu0 0.0
      %741 = vmatpush.msra.mxu0 0.0
      %742 = vmatpush.msra.mxu0 0.0
      %743 = vmatpush.msra.mxu0 0.0
      %744 = vmatpush.msra.mxu0 0.0
      %745 = vmatpush.msra.mxu0 0.0
      %746 = vmatpush.msra.mxu0 0.0
      %747 = vmatpush.msra.mxu0 0.0
      %748 = vmatpush.msra.mxu0 %v729
      %749 = vmatmul.f32.gmra.mxu0 %v727
      %v750 = vpop.f32.mrf.mxu0
      %v751 = vadd.f32 %v720, %v750
      %752 = vdwg.mxu0
      %753 = vmatpush.msra.mxu0 0.0
      %754 = vmatpush.msra.mxu0 0.0
      %755 = vmatpush.msra.mxu0 0.0
      %756 = vmatpush.msra.mxu0 0.0
      %757 = vmatpush.msra.mxu0 0.0
      %758 = vmatpush.msra.mxu0 0.0
      %759 = vmatpush.msra.mxu0 0.0
      %760 = vmatpush.msra.mxu0 0.0
      %761 = vmatpush.msra.mxu0 0.0
      %762 = vmatpush.msra.mxu0 0.0
      %763 = vmatpush.msra.mxu0 0.0
      %764 = vmatpush.msra.mxu0 0.0
      %765 = vmatpush.msra.mxu0 0.0
      %766 = vmatpush.msra.mxu0 0.0
      %767 = vmatpush.msra.mxu0 0.0
      %768 = vmatpush.msra.mxu0 %v731
      %769 = vmatmul.f32.gmra.mxu0 %v727
      %v770 = vpop.f32.mrf.mxu0
      %v771 = vadd.f32 %v720, %v770
      %772 = vdwg.mxu0
      %v775 = vrot.slane %v771, 4
      %v776 = vsel %vm223, %v751, %v775
      %778 = vst [vmem:[%s204] sm:$0xff] %v776
      %v779 = vsel %vm223, %v751, 0.0
      %v780 = vsel %vm223, %v771, 0.0
      %v781 = vadd.f32 %v779, %v780
      %782 = vadd.xlane.f32.xlu0 %v781
      %v783 = vpop.xlane.xlu0 %782
      %v784 = vmul.f32 %v751, %v751
      %v785 = vmul.f32 %v771, %v771
      %v786 = vsel %vm223, %v784, 0.0
      %v787 = vsel %vm223, %v785, 0.0
      %v788 = vadd.f32 %v786, %v787
      %789 = vadd.xlane.f32.xlu0 %v788
      %v790 = vpop.xlane.xlu0 %789
      %vm791 = vcmask 3072
      %792 = vst.msk [vmem:[%s208] sm:$0xf] %vm791, %v783
      %vm793 = vcmask 11272
      %794 = vst.msk [vmem:[%s208] sm:$0xf] %vm793, %v790
      %p795 = scmp.lt.s32.totalorder %s16, 1
      %s796 = scalar_select %p795, %s16, 1
      %s797 = smul.addr %s796, 2
      %s798 = smul.addr %s797, 4
      %s799 = scalar_lea.vmem %s3, %s798
      %p800 = scmp.lt.s32.totalorder %s16, 1
      %s801 = scalar_select %p800, %s16, 1
      %s802 = smul.addr %s801, 4
      %s803 = scalar_lea.vmem %s4, %s802
      // Predicated region
      $region33: #{nonlocal_block_pallas.2} parent=31 // pred_check
        %p804 = pneg %p102
      $region34: #{nonlocal_block_pallas.2} parent=31 // pred_check_branch
        %806 = sbr.rel (%p804) target = $region36
      $region35: #{nonlocal_block_pallas.2} parent=31 // pred_region
        _
      $region36: #{nonlocal_block_pallas.2} parent=31 // pred_fallthru
        _
      // Predicated region
      $region37: #{nonlocal_block_pallas.2} parent=31 // pred_check
        %p807 = pneg %p128
      $region38: #{nonlocal_block_pallas.2} parent=31 // pred_check_branch
        %809 = sbr.rel (%p807) target = $region40
      $region39: #{nonlocal_block_pallas.2} parent=31 // pred_region
        _
      $region40: #{nonlocal_block_pallas.2} parent=31 // pred_fallthru
        _
    $region32: #{nonlocal_block_pallas.2} parent=5 // pred_fallthru
      _
    %p810 = scmp.le.s32.totalorder 2, %s11
    // Predicated region
    $region41: #{nonlocal_block_pallas.2} parent=5 // pred_check
      %p811 = pneg %p810
    $region42: #{nonlocal_block_pallas.2} parent=5 // pred_check_branch
      %813 = sbr.rel (%p811) target = $region44
    $region43: #{nonlocal_block_pallas.2} parent=5 // pred_region
      %s814 = ssub.s32 %s11, 2
      // Predicated region
      $region45: #{nonlocal_block_pallas.2} parent=43 // pred_check
        %p815 = pneg %p108
      $region46: #{nonlocal_block_pallas.2} parent=43 // pred_check_branch
        %817 = sbr.rel (%p815) target = $region48
      $region47: #{nonlocal_block_pallas.2} parent=43 // pred_region
        %p818 = scmp.lt.s32.totalorder %s17, 1
        %s819 = scalar_select %p818, %s17, 1
        %s820 = smul.addr %s819, 2
        %s821 = smul.addr %s820, 4
        %s822 = scalar_lea.vmem %s3, %s821
      $region48: #{nonlocal_block_pallas.2} parent=43 // pred_fallthru
        _
      // Predicated region
      $region49: #{nonlocal_block_pallas.2} parent=43 // pred_check
        %p823 = pneg %p134
      $region50: #{nonlocal_block_pallas.2} parent=43 // pred_check_branch
        %825 = sbr.rel (%p823) target = $region52
      $region51: #{nonlocal_block_pallas.2} parent=43 // pred_region
        %p826 = scmp.lt.s32.totalorder %s17, 1
        %s827 = scalar_select %p826, %s17, 1
        %s828 = smul.addr %s827, 4
        %s829 = scalar_lea.vmem %s4, %s828
      $region52: #{nonlocal_block_pallas.2} parent=43 // pred_fallthru
        _
    $region44: #{nonlocal_block_pallas.2} parent=5 // pred_fallthru
      _
  $region6: #{nonlocal_block_pallas.2} parent=0 // loop_footer
    %s15 = sadd.s32 1, %s11
  $region7: #{nonlocal_block_pallas.2} parent=0 // loop_footer_branch
    %10 = sbr.rel target = $region3
  $region8: #{nonlocal_block_pallas.2} parent=0 // loop_exit
    _

</llo_original>
